<compile_context>
chip_gen: v6e
topology: v6e:2x2x1
jax: 0.10.0
libtpu: 0.0.40
codegen_flags: <defaults>
</compile_context>

<pallas_src>
import functools

import jax
import jax.numpy as jnp
from jax.experimental import pallas as pl
from jax.experimental.pallas import tpu as pltpu

_LANE = 128
_SUBLANE = 8


def _round_up(n, m):
    return ((n + m - 1) // m) * m


def _pad_to(a, shape):
    pads = [(0, t - s) for s, t in zip(a.shape, shape)]
    if all(p == (0, 0) for p in pads):
        return a
    return jnp.pad(a, pads)


def _mlp_kernel(x_ref,
                w1_ref, b1_ref,
                w2_ref, b2_ref,
                w3_ref, b3_ref,
                w4_ref, b4_ref,
                out_ref):
    """Fused 3-hidden-layer MLP + log_softmax for one batch tile.

    All matmuls accumulate in f32 on the MXU; bias add / ReLU / log_softmax
    run in f32.  Dropout layers are inference-mode identity.
    """
    # layer1 + ReLU   (dropout1 == identity at inference)
    h = jnp.dot(x_ref[...].astype(w1_ref.dtype), w1_ref[...],
                preferred_element_type=jnp.float32)
    h = jnp.maximum(h + b1_ref[...], 0.0)

    # layer2 + ReLU   (dropout2 == identity at inference)
    h = jnp.dot(h.astype(w2_ref.dtype), w2_ref[...],
                preferred_element_type=jnp.float32)
    h = jnp.maximum(h + b2_ref[...], 0.0)

    # layer3 + ReLU   (dropout3 == identity at inference)
    h = jnp.dot(h.astype(w3_ref.dtype), w3_ref[...],
                preferred_element_type=jnp.float32)
    h = jnp.maximum(h + b3_ref[...], 0.0)

    # out_layer: C is unpadded (4 real classes), so no class-lane masking.
    logits = jnp.dot(h.astype(w4_ref.dtype), w4_ref[...],
                     preferred_element_type=jnp.float32)
    logits = logits + b4_ref[...]

    # log_softmax over the class axis.
    m = jnp.max(logits, axis=1, keepdims=True)
    shifted = logits - m
    lse = jnp.log(jnp.sum(jnp.exp(shifted), axis=1, keepdims=True))
    out_ref[...] = (shifted - lse).astype(out_ref.dtype)


@functools.partial(jax.jit, static_argnames=("tm", "compute_dtype"))
def mlp_forward(x, params, *, tm=1024, compute_dtype=jnp.bfloat16):
    """x: [B, F]; params: dict name -> (w [in, out] f32, b [1, out] f32)."""
    w1, b1 = params["layer1"]
    w2, b2 = params["layer2"]
    w3, b3 = params["layer3"]
    w4, b4 = params["out_layer"]

    B, F = x.shape
    H1, H2, H3, C = w1.shape[1], w2.shape[1], w3.shape[1], w4.shape[1]

    # Only the hidden dims are padded (zero weights / zero bias) to full
    # 128-lane width; F (streamed input) and C (output) stay unpadded.
    H1p = _round_up(H1, _LANE)
    H2p = _round_up(H2, _LANE)
    H3p = _round_up(H3, _LANE)

    # Batch tile: large to amortize per-step overhead, clamped so (a) it is a
    # multiple of 8, (b) the grid has >= 2 steps when B > 8 (v7x megacore).
    if B <= _SUBLANE:
        tm = B
    else:
        tm = max(_SUBLANE, min(tm, _round_up(pl.cdiv(B, 2), _SUBLANE)))
    grid = (pl.cdiv(B, tm),)   # ragged last block: output store is masked

    cdt = compute_dtype
    xc = x.astype(cdt)
    w1p, b1p = _pad_to(w1.astype(cdt), (F, H1p)),   _pad_to(b1, (1, H1p))
    w2p, b2p = _pad_to(w2.astype(cdt), (H1p, H2p)), _pad_to(b2, (1, H2p))
    w3p, b3p = _pad_to(w3.astype(cdt), (H2p, H3p)), _pad_to(b3, (1, H3p))
    w4p, b4p = _pad_to(w4.astype(cdt), (H3p, C)),   b4

    def resident(shape):
        # Weights/biases: same block every grid step -> stay VMEM-resident.
        return pl.BlockSpec(shape, lambda i: (0, 0))

    in_specs = [
        pl.BlockSpec((tm, F), lambda i: (i, 0)),   # X: streamed per batch tile
        resident((F, H1p)),   resident((1, H1p)),
        resident((H1p, H2p)), resident((1, H2p)),
        resident((H2p, H3p)), resident((1, H3p)),
        resident((H3p, C)),   resident((1, C)),
    ]
    out_specs = pl.BlockSpec((tm, C), lambda i: (i, 0))

    x_itemsize = jnp.dtype(cdt).itemsize
    weight_bytes = sum(int(a.size) * jnp.dtype(a.dtype).itemsize
                       for a in (w1p, b1p, w2p, b2p, w3p, b3p, w4p, b4p))
    cost = pl.CostEstimate(
        flops=2 * B * (F * H1p + H1p * H2p + H2p * H3p + H3p * C),
        transcendentals=B * (C + 1),
        bytes_accessed=B * F * x_itemsize + B * C * 4 + weight_bytes,
    )

    return pl.pallas_call(
        _mlp_kernel,
        out_shape=jax.ShapeDtypeStruct((B, C), jnp.float32),
        grid=grid,
        in_specs=in_specs,
        out_specs=out_specs,
        compiler_params=pltpu.CompilerParams(
            dimension_semantics=("parallel",),
        ),
        cost_estimate=cost,
    )(xc, w1p, b1p, w2p, b2p, w3p, b3p, w4p, b4p)


def init_params(key, n_features, n_neurons, n_classes=4):
    """PyTorch-style uniform(-1/sqrt(fan_in), 1/sqrt(fan_in)); w stored [in, out]."""
    dims = [n_features] + list(n_neurons) + [n_classes]
    names = ["layer1", "layer2", "layer3", "out_layer"]
    params = {}
    for name, fan_in, fan_out in zip(names, dims[:-1], dims[1:]):
        key, kw, kb = jax.random.split(key, 3)
        bound = 1.0 / (fan_in ** 0.5)
        w = jax.random.uniform(kw, (fan_in, fan_out), jnp.float32, -bound, bound)
        b = jax.random.uniform(kb, (1, fan_out), jnp.float32, -bound, bound)
        params[name] = (w, b)
    return params


def _reference(x, params, compute_dtype=jnp.float32):
    """Pure-JAX reference; quantizes x/w/intermediates like the kernel does."""
    def q(a):
        return a.astype(compute_dtype).astype(jnp.float32)

    h = q(x)
    for name in ["layer1", "layer2", "layer3"]:
        w, b = params[name]
        h = q(jnp.maximum(h @ q(w) + b, 0.0))
    w, b = params["out_layer"]
    logits = h @ q(w) + b
    return jax.nn.log_softmax(logits, axis=1)


if __name__ == "__main__":
    key = jax.random.PRNGKey(0)
    k_x, k_p = jax.random.split(key)

    batch = 8
    n_features = 32
    n_neurons = [64, 64, 32]
    dropouts = [0.1, 0.1, 0.1]  # inference mode -> identity
    n_classes = 4

    x = jax.random.normal(k_x, (batch, n_features), jnp.float32)
    params = init_params(k_p, n_features, n_neurons, n_classes)

    # f32 compute path: tight check against the pure-JAX reference.
    out_f32 = jax.block_until_ready(mlp_forward(x, params, compute_dtype=jnp.float32))
    ref_f32 = _reference(x, params, jnp.float32)
    assert out_f32.shape == (batch, n_classes), out_f32.shape
    assert jnp.allclose(out_f32, ref_f32, atol=1e-5, rtol=1e-5), "f32 mismatch"

    # bf16 compute path (perf default): check against a matching bf16-quantized
    # reference (tight) and the f32 reference (loose).
    out_bf16 = jax.block_until_ready(mlp_forward(x, params))
    ref_bf16 = _reference(x, params, jnp.bfloat16)
    assert jnp.allclose(out_bf16, ref_bf16, atol=2e-3, rtol=2e-3), "bf16 mismatch"
    assert jnp.allclose(out_bf16, ref_f32, atol=5e-2, rtol=5e-2), "bf16 drift vs f32"

    # Multi-tile grid with a ragged last block (B=300 not a multiple of tm).
    k_big, _ = jax.random.split(k_x)
    x_big = jax.random.normal(k_big, (300, n_features), jnp.float32)
    out_big = jax.block_until_ready(mlp_forward(x_big, params, tm=128))
    ref_big = _reference(x_big, params, jnp.bfloat16)
    assert out_big.shape == (300, n_classes)
    assert jnp.allclose(out_big, ref_big, atol=2e-3, rtol=2e-3), "tiled-path mismatch"

    print("KERNEL_OK")
</pallas_src>

<mosaic_0001>
module attributes {stable_mosaic.version = 11 : i64} {
  func.func @_mlp_kernel(%arg0: i32, %arg1: memref<8x32xf32, #tpu.memory_space<vmem>>, %arg2: memref<32x128xf32, #tpu.memory_space<vmem>>, %arg3: memref<1x128xf32, #tpu.memory_space<vmem>>, %arg4: memref<128x128xf32, #tpu.memory_space<vmem>>, %arg5: memref<1x128xf32, #tpu.memory_space<vmem>>, %arg6: memref<128x128xf32, #tpu.memory_space<vmem>>, %arg7: memref<1x128xf32, #tpu.memory_space<vmem>>, %arg8: memref<128x4xf32, #tpu.memory_space<vmem>>, %arg9: memref<1x4xf32, #tpu.memory_space<vmem>>, %arg10: memref<8x4xf32, #tpu.memory_space<vmem>>) attributes {dimension_semantics = [#tpu.dimension_semantics<parallel>], iteration_bounds = array<i64: 1>, scalar_prefetch = 0 : i64, scratch_operands = 0 : i64, tpu.core_type = #tpu.core_type<tc>, window_params = [{transform_indices = @transform_0, window_bounds = array<i64: 8, 32>}, {pipeline_mode = #tpu.pipeline_mode<synchronous>, transform_indices = @transform_1, window_bounds = array<i64: 32, 128>}, {pipeline_mode = #tpu.pipeline_mode<synchronous>, transform_indices = @transform_2, window_bounds = array<i64: 1, 128>}, {pipeline_mode = #tpu.pipeline_mode<synchronous>, transform_indices = @transform_3, window_bounds = array<i64: 128, 128>}, {pipeline_mode = #tpu.pipeline_mode<synchronous>, transform_indices = @transform_4, window_bounds = array<i64: 1, 128>}, {pipeline_mode = #tpu.pipeline_mode<synchronous>, transform_indices = @transform_5, window_bounds = array<i64: 128, 128>}, {pipeline_mode = #tpu.pipeline_mode<synchronous>, transform_indices = @transform_6, window_bounds = array<i64: 1, 128>}, {pipeline_mode = #tpu.pipeline_mode<synchronous>, transform_indices = @transform_7, window_bounds = array<i64: 128, 4>}, {pipeline_mode = #tpu.pipeline_mode<synchronous>, transform_indices = @transform_8, window_bounds = array<i64: 1, 4>}, {transform_indices = @transform_9, window_bounds = array<i64: 8, 4>}]} {
    %c0 = arith.constant 0 : index
    %c0_0 = arith.constant 0 : index
    %0 = vector.load %arg1[%c0, %c0_0] : memref<8x32xf32, #tpu.memory_space<vmem>>, vector<8x32xf32>
    %c0_1 = arith.constant 0 : index
    %c0_2 = arith.constant 0 : index
    %1 = vector.load %arg2[%c0_1, %c0_2] : memref<32x128xf32, #tpu.memory_space<vmem>>, vector<32x128xf32>
    %cst = arith.constant dense<0.000000e+00> : vector<8x128xf32>
    %2 = tpu.matmul %0, %1, %cst {dimension_numbers = #tpu.dot_dimension_numbers<[1], [0], [0], [1], [0, 0, 1, 1], [], []>} : vector<8x32xf32>, vector<32x128xf32>, vector<8x128xf32> -> vector<8x128xf32>
    %c0_3 = arith.constant 0 : index
    %c0_4 = arith.constant 0 : index
    %3 = vector.load %arg3[%c0_3, %c0_4] : memref<1x128xf32, #tpu.memory_space<vmem>>, vector<1x128xf32>
    %4 = vector.broadcast %3 : vector<1x128xf32> to vector<8x128xf32>
    %5 = arith.addf %2, %4 : vector<8x128xf32>
    %cst_5 = arith.constant 0.000000e+00 : f32
    %6 = vector.broadcast %cst_5 : f32 to vector<8x128xf32>
    %7 = arith.maximumf %5, %6 : vector<8x128xf32>
    %c0_6 = arith.constant 0 : index
    %c0_7 = arith.constant 0 : index
    %8 = vector.load %arg4[%c0_6, %c0_7] : memref<128x128xf32, #tpu.memory_space<vmem>>, vector<128x128xf32>
    %cst_8 = arith.constant dense<0.000000e+00> : vector<8x128xf32>
    %9 = tpu.matmul %7, %8, %cst_8 {dimension_numbers = #tpu.dot_dimension_numbers<[1], [0], [0], [1], [0, 0, 1, 1], [], []>} : vector<8x128xf32>, vector<128x128xf32>, vector<8x128xf32> -> vector<8x128xf32>
    %c0_9 = arith.constant 0 : index
    %c0_10 = arith.constant 0 : index
    %10 = vector.load %arg5[%c0_9, %c0_10] : memref<1x128xf32, #tpu.memory_space<vmem>>, vector<1x128xf32>
    %11 = vector.broadcast %10 : vector<1x128xf32> to vector<8x128xf32>
    %12 = arith.addf %9, %11 : vector<8x128xf32>
    %cst_11 = arith.constant 0.000000e+00 : f32
    %13 = vector.broadcast %cst_11 : f32 to vector<8x128xf32>
    %14 = arith.maximumf %12, %13 : vector<8x128xf32>
    %c0_12 = arith.constant 0 : index
    %c0_13 = arith.constant 0 : index
    %15 = vector.load %arg6[%c0_12, %c0_13] : memref<128x128xf32, #tpu.memory_space<vmem>>, vector<128x128xf32>
    %cst_14 = arith.constant dense<0.000000e+00> : vector<8x128xf32>
    %16 = tpu.matmul %14, %15, %cst_14 {dimension_numbers = #tpu.dot_dimension_numbers<[1], [0], [0], [1], [0, 0, 1, 1], [], []>} : vector<8x128xf32>, vector<128x128xf32>, vector<8x128xf32> -> vector<8x128xf32>
    %c0_15 = arith.constant 0 : index
    %c0_16 = arith.constant 0 : index
    %17 = vector.load %arg7[%c0_15, %c0_16] : memref<1x128xf32, #tpu.memory_space<vmem>>, vector<1x128xf32>
    %18 = vector.broadcast %17 : vector<1x128xf32> to vector<8x128xf32>
    %19 = arith.addf %16, %18 : vector<8x128xf32>
    %cst_17 = arith.constant 0.000000e+00 : f32
    %20 = vector.broadcast %cst_17 : f32 to vector<8x128xf32>
    %21 = arith.maximumf %19, %20 : vector<8x128xf32>
    %c0_18 = arith.constant 0 : index
    %c0_19 = arith.constant 0 : index
    %22 = vector.load %arg8[%c0_18, %c0_19] : memref<128x4xf32, #tpu.memory_space<vmem>>, vector<128x4xf32>
    %cst_20 = arith.constant dense<0.000000e+00> : vector<8x4xf32>
    %23 = tpu.matmul %21, %22, %cst_20 {dimension_numbers = #tpu.dot_dimension_numbers<[1], [0], [0], [1], [0, 0, 1, 1], [], []>} : vector<8x128xf32>, vector<128x4xf32>, vector<8x4xf32> -> vector<8x4xf32>
    %c0_21 = arith.constant 0 : index
    %c0_22 = arith.constant 0 : index
    %24 = vector.load %arg9[%c0_21, %c0_22] : memref<1x4xf32, #tpu.memory_space<vmem>>, vector<1x4xf32>
    %25 = vector.broadcast %24 : vector<1x4xf32> to vector<8x4xf32>
    %26 = arith.addf %23, %25 : vector<8x4xf32>
    %cst_23 = arith.constant dense<0xFF800000> : vector<8xf32>
    %27 = vector.multi_reduction <maximumf>, %26, %cst_23 [1] : vector<8x4xf32> to vector<8xf32>
    %28 = vector.shape_cast %27 : vector<8xf32> to vector<8x1xf32>
    %29 = vector.broadcast %28 : vector<8x1xf32> to vector<8x4xf32>
    %30 = arith.subf %26, %29 : vector<8x4xf32>
    %31 = math.exp %30 : vector<8x4xf32>
    %cst_24 = arith.constant dense<0.000000e+00> : vector<8xf32>
    %32 = vector.multi_reduction <add>, %31, %cst_24 [1] : vector<8x4xf32> to vector<8xf32>
    %33 = vector.shape_cast %32 : vector<8xf32> to vector<8x1xf32>
    %34 = math.log %33 : vector<8x1xf32>
    %35 = vector.broadcast %34 : vector<8x1xf32> to vector<8x4xf32>
    %36 = arith.subf %30, %35 : vector<8x4xf32>
    %c0_25 = arith.constant 0 : index
    %c0_26 = arith.constant 0 : index
    %37 = vector.load %arg10[%c0_25, %c0_26] : memref<8x4xf32, #tpu.memory_space<vmem>>, vector<8x4xf32>
    tpu.vector_store %arg10[%c0_25, %c0_26], %36 {strides = array<i32>} : memref<8x4xf32, #tpu.memory_space<vmem>>, vector<8x4xf32>,
    return
  }
  func.func @transform_0(%arg0: i32) -> (i32, i32) {
    %c0_i32 = arith.constant 0 : i32
    %c0_i32_0 = arith.constant 0 : i32
    return %arg0, %c0_i32 : i32, i32
  }
  func.func @transform_1(%arg0: i32) -> (i32, i32) {
    %c0_i32 = arith.constant 0 : i32
    %c0_i32_0 = arith.constant 0 : i32
    %c0_i32_1 = arith.constant 0 : i32
    return %c0_i32, %c0_i32_0 : i32, i32
  }
  func.func @transform_2(%arg0: i32) -> (i32, i32) {
    %c0_i32 = arith.constant 0 : i32
    %c0_i32_0 = arith.constant 0 : i32
    %c0_i32_1 = arith.constant 0 : i32
    return %c0_i32, %c0_i32_0 : i32, i32
  }
  func.func @transform_3(%arg0: i32) -> (i32, i32) {
    %c0_i32 = arith.constant 0 : i32
    %c0_i32_0 = arith.constant 0 : i32
    %c0_i32_1 = arith.constant 0 : i32
    return %c0_i32, %c0_i32_0 : i32, i32
  }
  func.func @transform_4(%arg0: i32) -> (i32, i32) {
    %c0_i32 = arith.constant 0 : i32
    %c0_i32_0 = arith.constant 0 : i32
    %c0_i32_1 = arith.constant 0 : i32
    return %c0_i32, %c0_i32_0 : i32, i32
  }
  func.func @transform_5(%arg0: i32) -> (i32, i32) {
    %c0_i32 = arith.constant 0 : i32
    %c0_i32_0 = arith.constant 0 : i32
    %c0_i32_1 = arith.constant 0 : i32
    return %c0_i32, %c0_i32_0 : i32, i32
  }
  func.func @transform_6(%arg0: i32) -> (i32, i32) {
    %c0_i32 = arith.constant 0 : i32
    %c0_i32_0 = arith.constant 0 : i32
    %c0_i32_1 = arith.constant 0 : i32
    return %c0_i32, %c0_i32_0 : i32, i32
  }
  func.func @transform_7(%arg0: i32) -> (i32, i32) {
    %c0_i32 = arith.constant 0 : i32
    %c0_i32_0 = arith.constant 0 : i32
    %c0_i32_1 = arith.constant 0 : i32
    return %c0_i32, %c0_i32_0 : i32, i32
  }
  func.func @transform_8(%arg0: i32) -> (i32, i32) {
    %c0_i32 = arith.constant 0 : i32
    %c0_i32_0 = arith.constant 0 : i32
    %c0_i32_1 = arith.constant 0 : i32
    return %c0_i32, %c0_i32_0 : i32, i32
  }
  func.func @transform_9(%arg0: i32) -> (i32, i32) {
    %c0_i32 = arith.constant 0 : i32
    %c0_i32_0 = arith.constant 0 : i32
    return %arg0, %c0_i32 : i32, i32
  }
}

</mosaic_0001>

<llo_original>
// kernel: mlp_forward.1
$region0: #{mlp_forward.1}
  #allocation0 [shape = 'u32[]', space=smem, size = 0x4, offset = 0x4, fixed_abs, tag = 'smem constant byte address 0x4 - core index']
  #allocation1 [shape = 'u32[144,128]{1,0:T(1,128)}', space=vmem, size = 0x12000, scoped, tag = 'internal scratch']
  %s0 = inlined_call_operand.vmem [shape: f32[8,32], index: 0, kind: input, shape index: {}]
  %s1 = inlined_call_operand.vmem [shape: f32[32,128], index: 1, kind: input, shape index: {}]
  %s2 = inlined_call_operand.vmem [shape: f32[1,128], index: 2, kind: input, shape index: {}]
  %s3 = inlined_call_operand.vmem [shape: f32[128,128], index: 3, kind: input, shape index: {}]
  %s4 = inlined_call_operand.vmem [shape: f32[1,128], index: 4, kind: input, shape index: {}]
  %s5 = inlined_call_operand.vmem [shape: f32[128,128], index: 5, kind: input, shape index: {}]
  %s6 = inlined_call_operand.vmem [shape: f32[1,128], index: 6, kind: input, shape index: {}]
  %s7 = inlined_call_operand.vmem [shape: f32[128,4], index: 7, kind: input, shape index: {}]
  %s8 = inlined_call_operand.vmem [shape: f32[1,4], index: 8, kind: input, shape index: {}]
  %s9 = inlined_call_operand.vmem [shape: f32[8,4], index: 9, kind: output, shape index: {}]
  %s10 = sld [smem:[#allocation0]]
  $region46: #{mlp_forward.1} parent=0
    _
  %s12 = ssub.s32 1, %s10
  %s13 = scalar_select 0, %s12, %s10
  // Predicated region
  $region2: #{mlp_forward.1} parent=0 // pred_check
    _
  $region3: #{mlp_forward.1} parent=0 // pred_check_branch
    %15 = sbr.rel (0) target = $region5
  $region4: #{mlp_forward.1} parent=0 // pred_region
    _
  $region5: #{mlp_forward.1} parent=0 // pred_fallthru
    _
  // Predicated region
  $region6: #{mlp_forward.1} parent=0 // pred_check
    _
  $region7: #{mlp_forward.1} parent=0 // pred_check_branch
    %17 = sbr.rel (0) target = $region9
  $region8: #{mlp_forward.1} parent=0 // pred_region
    _
  $region9: #{mlp_forward.1} parent=0 // pred_fallthru
    _
  // Predicated region
  $region10: #{mlp_forward.1} parent=0 // pred_check
    _
  $region11: #{mlp_forward.1} parent=0 // pred_check_branch
    %19 = sbr.rel (0) target = $region13
  $region12: #{mlp_forward.1} parent=0 // pred_region
    _
  $region13: #{mlp_forward.1} parent=0 // pred_fallthru
    _
  // Predicated region
  $region14: #{mlp_forward.1} parent=0 // pred_check
    _
  $region15: #{mlp_forward.1} parent=0 // pred_check_branch
    %21 = sbr.rel (0) target = $region17
  $region16: #{mlp_forward.1} parent=0 // pred_region
    _
  $region17: #{mlp_forward.1} parent=0 // pred_fallthru
    _
  // Predicated region
  $region18: #{mlp_forward.1} parent=0 // pred_check
    _
  $region19: #{mlp_forward.1} parent=0 // pred_check_branch
    %23 = sbr.rel (0) target = $region21
  $region20: #{mlp_forward.1} parent=0 // pred_region
    _
  $region21: #{mlp_forward.1} parent=0 // pred_fallthru
    _
  // Predicated region
  $region22: #{mlp_forward.1} parent=0 // pred_check
    _
  $region23: #{mlp_forward.1} parent=0 // pred_check_branch
    %25 = sbr.rel (0) target = $region25
  $region24: #{mlp_forward.1} parent=0 // pred_region
    _
  $region25: #{mlp_forward.1} parent=0 // pred_fallthru
    _
  // Predicated region
  $region26: #{mlp_forward.1} parent=0 // pred_check
    _
  $region27: #{mlp_forward.1} parent=0 // pred_check_branch
    %27 = sbr.rel (0) target = $region29
  $region28: #{mlp_forward.1} parent=0 // pred_region
    _
  $region29: #{mlp_forward.1} parent=0 // pred_fallthru
    _
  // Predicated region
  $region30: #{mlp_forward.1} parent=0 // pred_check
    _
  $region31: #{mlp_forward.1} parent=0 // pred_check_branch
    %29 = sbr.rel (0) target = $region33
  $region32: #{mlp_forward.1} parent=0 // pred_region
    _
  $region33: #{mlp_forward.1} parent=0 // pred_fallthru
    _
  // Predicated region
  $region34: #{mlp_forward.1} parent=0 // pred_check
    _
  $region35: #{mlp_forward.1} parent=0 // pred_check_branch
    %31 = sbr.rel (0) target = $region37
  $region36: #{mlp_forward.1} parent=0 // pred_region
    _
  $region37: #{mlp_forward.1} parent=0 // pred_fallthru
    _
  %v32 = vld [vmem:[%s0] sm:$0xff]
  %v33 = vld [vmem:[%s1] sm:$0xff]
  %v34 = vld [vmem:[%s1 + $0x8] sm:$0xff]
  %v35 = vld [vmem:[%s1 + $0x10] sm:$0xff]
  %v36 = vld [vmem:[%s1 + $0x18] sm:$0xff]
  %v37 = vld [vmem:[%s2] sm:$0x1]
  %v39 = vlaneseq
  %v40 = vshrl.u32 %v39, 7
  %v41 = vsub.s32 0, %v40
  %v42 = vrot.slane %v37, %v41
  %vm44 = vcmask 261120
  %v46 = vsel %vm44, %v32, 0
  %48 = vmatprep.subr.mxu0 0.0
  %49 = vmatpush1.msra.mxu0 0.0
  %50 = vmatprep.subr.mxu0 0.0
  %51 = vmatpush1.msra.mxu0 0.0
  %52 = vmatprep.subr.mxu0 0.0
  %53 = vmatpush1.msra.mxu0 0.0
  %54 = vmatprep.subr.mxu0 0.0
  %55 = vmatpush1.msra.mxu0 0.0
  %56 = vmatprep.subr.mxu0 0.0
  %57 = vmatpush1.msra.mxu0 0.0
  %58 = vmatprep.subr.mxu0 0.0
  %59 = vmatpush1.msra.mxu0 0.0
  %60 = vmatprep.subr.mxu0 0.0
  %61 = vmatpush1.msra.mxu0 0.0
  %62 = vmatprep.subr.mxu0 0.0
  %63 = vmatpush1.msra.mxu0 0.0
  %64 = vmatprep.subr.mxu0 0.0
  %65 = vmatpush1.msra.mxu0 0.0
  %66 = vmatprep.subr.mxu0 0.0
  %67 = vmatpush1.msra.mxu0 0.0
  %68 = vmatprep.subr.mxu0 0.0
  %69 = vmatpush1.msra.mxu0 0.0
  %70 = vmatprep.subr.mxu0 0.0
  %71 = vmatpush1.msra.mxu0 0.0
  %72 = vmatprep.subr.mxu0 0.0
  %73 = vmatpush1.msra.mxu0 %v36
  %74 = vmatprep.subr.mxu0 0.0
  %75 = vmatpush1.msra.mxu0 %v35
  %76 = vmatprep.subr.mxu0 0.0
  %77 = vmatpush1.msra.mxu0 %v34
  %78 = vmatprep.subr.mxu0 0.0
  %79 = vmatpush1.msra.mxu0 %v33
  %80 = vmatprep.subr.mxu0 0.0
  %81 = vmatpush2.msra.mxu0 0.0
  %82 = vmatprep.subr.mxu0 0.0
  %83 = vmatpush2.msra.mxu0 0.0
  %84 = vmatprep.subr.mxu0 0.0
  %85 = vmatpush2.msra.mxu0 0.0
  %86 = vmatprep.subr.mxu0 0.0
  %87 = vmatpush2.msra.mxu0 0.0
  %88 = vmatprep.subr.mxu0 0.0
  %89 = vmatpush2.msra.mxu0 0.0
  %90 = vmatprep.subr.mxu0 0.0
  %91 = vmatpush2.msra.mxu0 0.0
  %92 = vmatprep.subr.mxu0 0.0
  %93 = vmatpush2.msra.mxu0 0.0
  %94 = vmatprep.subr.mxu0 0.0
  %95 = vmatpush2.msra.mxu0 0.0
  %96 = vmatprep.subr.mxu0 0.0
  %97 = vmatpush2.msra.mxu0 0.0
  %98 = vmatprep.subr.mxu0 0.0
  %99 = vmatpush2.msra.mxu0 0.0
  %100 = vmatprep.subr.mxu0 0.0
  %101 = vmatpush2.msra.mxu0 0.0
  %102 = vmatprep.subr.mxu0 0.0
  %103 = vmatpush2.msra.mxu0 0.0
  %104 = vmatprep.subr.mxu0 0.0
  %105 = vmatpush2.msra.mxu0 0.0
  %106 = vmatprep.subr.mxu0 0.0
  %107 = vmatpush2.msra.mxu0 0.0
  %108 = vmatprep.subr.mxu0 0.0
  %109 = vmatpush2.msra.mxu0 0.0
  %110 = vmatprep.subr.mxu0 0.0
  %111 = vmatpush2.msra.mxu0 0.0
  %112 = vmatprep.mubr.f32.mxu0 0.0
  %113 = vmatmul.mubr.f32.gmra.mxu0 %v46
  %v114 = vpop.f32.mrf.mxu0
  %v115 = vadd.f32 %v42, %v114
  %v116 = vpop.f32.mrf.mxu0
  %117 = vdwg.mxu0
  %v118 = vmax.f32 %v115, 0.0
  %v119 = vld [vmem:[%s3] sm:$0xff]
  %v120 = vld [vmem:[%s3 + $0x8] sm:$0xff]
  %v121 = vld [vmem:[%s3 + $0x10] sm:$0xff]
  %v122 = vld [vmem:[%s3 + $0x18] sm:$0xff]
  %v123 = vld [vmem:[%s3 + $0x20] sm:$0xff]
  %v124 = vld [vmem:[%s3 + $0x28] sm:$0xff]
  %v125 = vld [vmem:[%s3 + $0x30] sm:$0xff]
  %v126 = vld [vmem:[%s3 + $0x38] sm:$0xff]
  %v127 = vld [vmem:[%s3 + $0x40] sm:$0xff]
  %v128 = vld [vmem:[%s3 + $0x48] sm:$0xff]
  %v129 = vld [vmem:[%s3 + $0x50] sm:$0xff]
  %v130 = vld [vmem:[%s3 + $0x58] sm:$0xff]
  %v131 = vld [vmem:[%s3 + $0x60] sm:$0xff]
  %v132 = vld [vmem:[%s3 + $0x68] sm:$0xff]
  %v133 = vld [vmem:[%s3 + $0x70] sm:$0xff]
  %v134 = vld [vmem:[%s3 + $0x78] sm:$0xff]
  %v135 = vld [vmem:[%s4] sm:$0x1]
  %v137 = vlaneseq
  %v138 = vshrl.u32 %v137, 7
  %v139 = vsub.s32 0, %v138
  %v140 = vrot.slane %v135, %v139
  %142 = vmatprep.subr.mxu0 0.0
  %143 = vmatpush1.msra.mxu0 %v134
  %144 = vmatprep.subr.mxu0 0.0
  %145 = vmatpush1.msra.mxu0 %v133
  %146 = vmatprep.subr.mxu0 0.0
  %147 = vmatpush1.msra.mxu0 %v132
  %148 = vmatprep.subr.mxu0 0.0
  %149 = vmatpush1.msra.mxu0 %v131
  %150 = vmatprep.subr.mxu0 0.0
  %151 = vmatpush1.msra.mxu0 %v130
  %152 = vmatprep.subr.mxu0 0.0
  %153 = vmatpush1.msra.mxu0 %v129
  %154 = vmatprep.subr.mxu0 0.0
  %155 = vmatpush1.msra.mxu0 %v128
  %156 = vmatprep.subr.mxu0 0.0
  %157 = vmatpush1.msra.mxu0 %v127
  %158 = vmatprep.subr.mxu0 0.0
  %159 = vmatpush1.msra.mxu0 %v126
  %160 = vmatprep.subr.mxu0 0.0
  %161 = vmatpush1.msra.mxu0 %v125
  %162 = vmatprep.subr.mxu0 0.0
  %163 = vmatpush1.msra.mxu0 %v124
  %164 = vmatprep.subr.mxu0 0.0
  %165 = vmatpush1.msra.mxu0 %v123
  %166 = vmatprep.subr.mxu0 0.0
  %167 = vmatpush1.msra.mxu0 %v122
  %168 = vmatprep.subr.mxu0 0.0
  %169 = vmatpush1.msra.mxu0 %v121
  %170 = vmatprep.subr.mxu0 0.0
  %171 = vmatpush1.msra.mxu0 %v120
  %172 = vmatprep.subr.mxu0 0.0
  %173 = vmatpush1.msra.mxu0 %v119
  %174 = vmatprep.subr.mxu0 0.0
  %175 = vmatpush2.msra.mxu0 0.0
  %176 = vmatprep.subr.mxu0 0.0
  %177 = vmatpush2.msra.mxu0 0.0
  %178 = vmatprep.subr.mxu0 0.0
  %179 = vmatpush2.msra.mxu0 0.0
  %180 = vmatprep.subr.mxu0 0.0
  %181 = vmatpush2.msra.mxu0 0.0
  %182 = vmatprep.subr.mxu0 0.0
  %183 = vmatpush2.msra.mxu0 0.0
  %184 = vmatprep.subr.mxu0 0.0
  %185 = vmatpush2.msra.mxu0 0.0
  %186 = vmatprep.subr.mxu0 0.0
  %187 = vmatpush2.msra.mxu0 0.0
  %188 = vmatprep.subr.mxu0 0.0
  %189 = vmatpush2.msra.mxu0 0.0
  %190 = vmatprep.subr.mxu0 0.0
  %191 = vmatpush2.msra.mxu0 0.0
  %192 = vmatprep.subr.mxu0 0.0
  %193 = vmatpush2.msra.mxu0 0.0
  %194 = vmatprep.subr.mxu0 0.0
  %195 = vmatpush2.msra.mxu0 0.0
  %196 = vmatprep.subr.mxu0 0.0
  %197 = vmatpush2.msra.mxu0 0.0
  %198 = vmatprep.subr.mxu0 0.0
  %199 = vmatpush2.msra.mxu0 0.0
  %200 = vmatprep.subr.mxu0 0.0
  %201 = vmatpush2.msra.mxu0 0.0
  %202 = vmatprep.subr.mxu0 0.0
  %203 = vmatpush2.msra.mxu0 0.0
  %204 = vmatprep.subr.mxu0 0.0
  %205 = vmatpush2.msra.mxu0 0.0
  %206 = vmatprep.mubr.f32.mxu0 0.0
  %207 = vmatmul.mubr.f32.gmra.mxu0 %v118
  %v208 = vpop.f32.mrf.mxu0
  %v209 = vadd.f32 %v140, %v208
  %v210 = vpop.f32.mrf.mxu0
  %211 = vdwg.mxu0
  %v212 = vmax.f32 %v209, 0.0
  %v213 = vld [vmem:[%s5] sm:$0xff]
  %v214 = vld [vmem:[%s5 + $0x8] sm:$0xff]
  %v215 = vld [vmem:[%s5 + $0x10] sm:$0xff]
  %v216 = vld [vmem:[%s5 + $0x18] sm:$0xff]
  %v217 = vld [vmem:[%s5 + $0x20] sm:$0xff]
  %v218 = vld [vmem:[%s5 + $0x28] sm:$0xff]
  %v219 = vld [vmem:[%s5 + $0x30] sm:$0xff]
  %v220 = vld [vmem:[%s5 + $0x38] sm:$0xff]
  %v221 = vld [vmem:[%s5 + $0x40] sm:$0xff]
  %v222 = vld [vmem:[%s5 + $0x48] sm:$0xff]
  %v223 = vld [vmem:[%s5 + $0x50] sm:$0xff]
  %v224 = vld [vmem:[%s5 + $0x58] sm:$0xff]
  %v225 = vld [vmem:[%s5 + $0x60] sm:$0xff]
  %v226 = vld [vmem:[%s5 + $0x68] sm:$0xff]
  %v227 = vld [vmem:[%s5 + $0x70] sm:$0xff]
  %v228 = vld [vmem:[%s5 + $0x78] sm:$0xff]
  %v229 = vld [vmem:[%s6] sm:$0x1]
  %v231 = vlaneseq
  %v232 = vshrl.u32 %v231, 7
  %v233 = vsub.s32 0, %v232
  %v234 = vrot.slane %v229, %v233
  %236 = vmatprep.subr.mxu0 0.0
  %237 = vmatpush1.msra.mxu0 %v228
  %238 = vmatprep.subr.mxu0 0.0
  %239 = vmatpush1.msra.mxu0 %v227
  %240 = vmatprep.subr.mxu0 0.0
  %241 = vmatpush1.msra.mxu0 %v226
  %242 = vmatprep.subr.mxu0 0.0
  %243 = vmatpush1.msra.mxu0 %v225
  %244 = vmatprep.subr.mxu0 0.0
  %245 = vmatpush1.msra.mxu0 %v224
  %246 = vmatprep.subr.mxu0 0.0
  %247 = vmatpush1.msra.mxu0 %v223
  %248 = vmatprep.subr.mxu0 0.0
  %249 = vmatpush1.msra.mxu0 %v222
  %250 = vmatprep.subr.mxu0 0.0
  %251 = vmatpush1.msra.mxu0 %v221
  %252 = vmatprep.subr.mxu0 0.0
  %253 = vmatpush1.msra.mxu0 %v220
  %254 = vmatprep.subr.mxu0 0.0
  %255 = vmatpush1.msra.mxu0 %v219
  %256 = vmatprep.subr.mxu0 0.0
  %257 = vmatpush1.msra.mxu0 %v218
  %258 = vmatprep.subr.mxu0 0.0
  %259 = vmatpush1.msra.mxu0 %v217
  %260 = vmatprep.subr.mxu0 0.0
  %261 = vmatpush1.msra.mxu0 %v216
  %262 = vmatprep.subr.mxu0 0.0
  %263 = vmatpush1.msra.mxu0 %v215
  %264 = vmatprep.subr.mxu0 0.0
  %265 = vmatpush1.msra.mxu0 %v214
  %266 = vmatprep.subr.mxu0 0.0
  %267 = vmatpush1.msra.mxu0 %v213
  %268 = vmatprep.subr.mxu0 0.0
  %269 = vmatpush2.msra.mxu0 0.0
  %270 = vmatprep.subr.mxu0 0.0
  %271 = vmatpush2.msra.mxu0 0.0
  %272 = vmatprep.subr.mxu0 0.0
  %273 = vmatpush2.msra.mxu0 0.0
  %274 = vmatprep.subr.mxu0 0.0
  %275 = vmatpush2.msra.mxu0 0.0
  %276 = vmatprep.subr.mxu0 0.0
  %277 = vmatpush2.msra.mxu0 0.0
  %278 = vmatprep.subr.mxu0 0.0
  %279 = vmatpush2.msra.mxu0 0.0
  %280 = vmatprep.subr.mxu0 0.0
  %281 = vmatpush2.msra.mxu0 0.0
  %282 = vmatprep.subr.mxu0 0.0
  %283 = vmatpush2.msra.mxu0 0.0
  %284 = vmatprep.subr.mxu0 0.0
  %285 = vmatpush2.msra.mxu0 0.0
  %286 = vmatprep.subr.mxu0 0.0
  %287 = vmatpush2.msra.mxu0 0.0
  %288 = vmatprep.subr.mxu0 0.0
  %289 = vmatpush2.msra.mxu0 0.0
  %290 = vmatprep.subr.mxu0 0.0
  %291 = vmatpush2.msra.mxu0 0.0
  %292 = vmatprep.subr.mxu0 0.0
  %293 = vmatpush2.msra.mxu0 0.0
  %294 = vmatprep.subr.mxu0 0.0
  %295 = vmatpush2.msra.mxu0 0.0
  %296 = vmatprep.subr.mxu0 0.0
  %297 = vmatpush2.msra.mxu0 0.0
  %298 = vmatprep.subr.mxu0 0.0
  %299 = vmatpush2.msra.mxu0 0.0
  %300 = vmatprep.mubr.f32.mxu0 0.0
  %301 = vmatmul.mubr.f32.gmra.mxu0 %v212
  %v302 = vpop.f32.mrf.mxu0
  %v303 = vadd.f32 %v234, %v302
  %v304 = vpop.f32.mrf.mxu0
  %305 = vdwg.mxu0
  %v306 = vmax.f32 %v303, 0.0
  %v307 = vld [vmem:[%s7] sm:$0xff]
  %v308 = vld [vmem:[%s7 + $0x8] sm:$0xff]
  %v309 = vld [vmem:[%s7 + $0x10] sm:$0xff]
  %v310 = vld [vmem:[%s7 + $0x18] sm:$0xff]
  %v311 = vld [vmem:[%s7 + $0x20] sm:$0xff]
  %v312 = vld [vmem:[%s7 + $0x28] sm:$0xff]
  %v313 = vld [vmem:[%s7 + $0x30] sm:$0xff]
  %v314 = vld [vmem:[%s7 + $0x38] sm:$0xff]
  %v315 = vld [vmem:[%s7 + $0x40] sm:$0xff]
  %v316 = vld [vmem:[%s7 + $0x48] sm:$0xff]
  %v317 = vld [vmem:[%s7 + $0x50] sm:$0xff]
  %v318 = vld [vmem:[%s7 + $0x58] sm:$0xff]
  %v319 = vld [vmem:[%s7 + $0x60] sm:$0xff]
  %v320 = vld [vmem:[%s7 + $0x68] sm:$0xff]
  %v321 = vld [vmem:[%s7 + $0x70] sm:$0xff]
  %v322 = vld [vmem:[%s7 + $0x78] sm:$0xff]
  %v323 = vld [vmem:[%s8] sm:$0x1]
  %v325 = vlaneseq
  %v326 = vshrl.u32 %v325, 7
  %v327 = vsub.s32 0, %v326
  %v328 = vrot.slane %v323, %v327
  %330 = vmatprep.subr.mxu0 0.0
  %331 = vmatpush1.msra.mxu0 %v322
  %332 = vmatprep.subr.mxu0 0.0
  %333 = vmatpush1.msra.mxu0 %v321
  %334 = vmatprep.subr.mxu0 0.0
  %335 = vmatpush1.msra.mxu0 %v320
  %336 = vmatprep.subr.mxu0 0.0
  %337 = vmatpush1.msra.mxu0 %v319
  %338 = vmatprep.subr.mxu0 0.0
  %339 = vmatpush1.msra.mxu0 %v318
  %340 = vmatprep.subr.mxu0 0.0
  %341 = vmatpush1.msra.mxu0 %v317
  %342 = vmatprep.subr.mxu0 0.0
  %343 = vmatpush1.msra.mxu0 %v316
  %344 = vmatprep.subr.mxu0 0.0
  %345 = vmatpush1.msra.mxu0 %v315
  %346 = vmatprep.subr.mxu0 0.0
  %347 = vmatpush1.msra.mxu0 %v314
  %348 = vmatprep.subr.mxu0 0.0
  %349 = vmatpush1.msra.mxu0 %v313
  %350 = vmatprep.subr.mxu0 0.0
  %351 = vmatpush1.msra.mxu0 %v312
  %352 = vmatprep.subr.mxu0 0.0
  %353 = vmatpush1.msra.mxu0 %v311
  %354 = vmatprep.subr.mxu0 0.0
  %355 = vmatpush1.msra.mxu0 %v310
  %356 = vmatprep.subr.mxu0 0.0
  %357 = vmatpush1.msra.mxu0 %v309
  %358 = vmatprep.subr.mxu0 0.0
  %359 = vmatpush1.msra.mxu0 %v308
  %360 = vmatprep.subr.mxu0 0.0
  %361 = vmatpush1.msra.mxu0 %v307
  %362 = vmatprep.subr.mxu0 0.0
  %363 = vmatpush2.msra.mxu0 0.0
  %364 = vmatprep.subr.mxu0 0.0
  %365 = vmatpush2.msra.mxu0 0.0
  %366 = vmatprep.subr.mxu0 0.0
  %367 = vmatpush2.msra.mxu0 0.0
  %368 = vmatprep.subr.mxu0 0.0
  %369 = vmatpush2.msra.mxu0 0.0
  %370 = vmatprep.subr.mxu0 0.0
  %371 = vmatpush2.msra.mxu0 0.0
  %372 = vmatprep.subr.mxu0 0.0
  %373 = vmatpush2.msra.mxu0 0.0
  %374 = vmatprep.subr.mxu0 0.0
  %375 = vmatpush2.msra.mxu0 0.0
  %376 = vmatprep.subr.mxu0 0.0
  %377 = vmatpush2.msra.mxu0 0.0
  %378 = vmatprep.subr.mxu0 0.0
  %379 = vmatpush2.msra.mxu0 0.0
  %380 = vmatprep.subr.mxu0 0.0
  %381 = vmatpush2.msra.mxu0 0.0
  %382 = vmatprep.subr.mxu0 0.0
  %383 = vmatpush2.msra.mxu0 0.0
  %384 = vmatprep.subr.mxu0 0.0
  %385 = vmatpush2.msra.mxu0 0.0
  %386 = vmatprep.subr.mxu0 0.0
  %387 = vmatpush2.msra.mxu0 0.0
  %388 = vmatprep.subr.mxu0 0.0
  %389 = vmatpush2.msra.mxu0 0.0
  %390 = vmatprep.subr.mxu0 0.0
  %391 = vmatpush2.msra.mxu0 0.0
  %392 = vmatprep.subr.mxu0 0.0
  %393 = vmatpush2.msra.mxu0 0.0
  %394 = vmatprep.mubr.f32.mxu0 0.0
  %395 = vmatmul.mubr.f32.gmra.mxu0 %v306
  %v396 = vpop.f32.mrf.mxu0
  %v397 = vadd.f32 %v328, %v396
  %v398 = vpop.f32.mrf.mxu0
  %399 = vdwg.mxu0
  %vm400 = vcmask 31744
  %v401 = vsel %vm400, %v397, -inf
  %402 = vmax.xlane.f32.xlu0 %v401
  %v403 = vpop.xlane.xlu0 %402
  %v404 = vsub.f32 %v397, %v403
  %v405 = vmul.f32 %v404, 1.442695
  %v406 = vpow.pop %v405
  %v407 = vsel %vm400, %v406, 0.0
  %408 = vadd.xlane.f32.xlu0 %v407
  %v409 = vpop.xlane.xlu0 %408
  %v410 = vlog2.pop %v409
  %v411 = vmul.f32 %v410, 0.6931472
  %v412 = vsub.f32 %v404, %v411
  %413 = vst.msk [vmem:[%s9] sm:$0xff] %vm400, %v412
  // Predicated region
  $region38: #{mlp_forward.1} parent=0 // pred_check
    _
  $region39: #{mlp_forward.1} parent=0 // pred_check_branch
    %415 = sbr.rel (0) target = $region41
  $region40: #{mlp_forward.1} parent=0 // pred_region
    _
  $region41: #{mlp_forward.1} parent=0 // pred_fallthru
    _
  // Predicated region
  $region42: #{mlp_forward.1} parent=0 // pred_check
    _
  $region43: #{mlp_forward.1} parent=0 // pred_check_branch
    %417 = sbr.rel (0) target = $region45
  $region44: #{mlp_forward.1} parent=0 // pred_region
    _
  $region45: #{mlp_forward.1} parent=0 // pred_fallthru
    _

</llo_original>
